<compile_context>
chip_gen: v7x
topology: tpu7x:2x2x1
jax: 0.10.0
libtpu: 0.0.40
codegen_flags: <defaults>
</compile_context>

<pallas_src>
import jax
import jax.numpy as jnp
from jax.experimental import pallas as pl
from jax.experimental.pallas import tpu as pltpu

_MAX_DMA_CHUNKS = 4
_MIN_CHUNK_BYTES = 1 * 1024 * 1024  # don't bother chunking tiny copies


def _make_dma_copy_kernel(chunks):
    """Build a kernel that copies `chunks` (static (start, size) row ranges)
    of the input HBM ref into the output HBM ref via concurrent DMAs."""

    def kernel(x_ref, o_ref, sem):
        copies = []
        for i, (start, size) in enumerate(chunks):
            cp = pltpu.make_async_copy(
                x_ref.at[pl.ds(start, size)],
                o_ref.at[pl.ds(start, size)],
                sem.at[i],
            )
            cp.start()
            copies.append(cp)
        for cp in copies:
            cp.wait()

    return kernel


def squeeze_extractor(x, *, use_kernel=True):
    """Pallas implementation of SqueezeExtractor.forward.

    Args:
      x: array of shape (N, C, 1, 1)  (NCHW with unit spatial dims).
      use_kernel: if False, return the pure-metadata reshape (fastest path,
        zero HBM traffic).  If True, emit a Pallas HBM->HBM DMA copy kernel
        (useful only as a fusion anchor).
    Returns:
      array of shape (N, 1, C), same dtype as x.
    """
    n, c, h, w = x.shape
    assert h == 1 and w == 1, "squeeze(2).squeeze(2) requires unit spatial dims"

    # Metadata-only rank change: (N, C, 1, 1) and (N, 1, C) share the same
    # row-major element order.
    x3d = x.reshape(n, 1, c)
    if not use_kernel:
        return x3d  # optimal: no kernel, no data movement.

    itemsize = jnp.dtype(x.dtype).itemsize
    total_bytes = n * c * itemsize

    # Split the copy into up to _MAX_DMA_CHUNKS concurrent DMAs along N
    # (only when each chunk stays >= _MIN_CHUNK_BYTES).
    num_chunks = max(1, min(_MAX_DMA_CHUNKS, n, total_bytes // _MIN_CHUNK_BYTES))
    base, rem = divmod(n, num_chunks)
    chunks = []
    start = 0
    for i in range(num_chunks):
        size = base + (1 if i < rem else 0)
        if size > 0:
            chunks.append((start, size))
            start += size
    chunks = tuple(chunks)

    cost = pl.CostEstimate(
        flops=0,
        transcendentals=0,
        bytes_accessed=2 * total_bytes,  # one read + one write of the array
    )

    out = pl.pallas_call(
        _make_dma_copy_kernel(chunks),
        out_shape=jax.ShapeDtypeStruct((n, 1, c), x.dtype),
        in_specs=[pl.BlockSpec(memory_space=pl.ANY)],   # raw HBM ref, no auto-DMA
        out_specs=pl.BlockSpec(memory_space=pl.ANY),    # raw HBM ref
        scratch_shapes=[pltpu.SemaphoreType.DMA((len(chunks),))],
        cost_estimate=cost,
    )(x3d)
    return out


def _reference(x):
    return jnp.expand_dims(jnp.squeeze(jnp.squeeze(x, axis=2), axis=2), axis=1)


if __name__ == "__main__":
    key = jax.random.PRNGKey(0)
    keys = jax.random.split(key, 4)

    cases = [
        ((2, 128, 1, 1), jnp.float32),    # small N, typical post-pool feature
        ((16, 256, 1, 1), jnp.float32),   # aligned, larger
        ((16, 256, 1, 1), jnp.bfloat16),  # sub-32-bit dtype (DMA path is dtype-agnostic)
        ((5, 37, 1, 1), jnp.float32),     # unaligned shape (no VMEM tiling constraints)
    ]

    for k, (shape, dtype) in zip(keys, cases):
        x = jax.random.normal(k, shape, dtype=dtype)
        out = jax.block_until_ready(squeeze_extractor(x))
        ref = _reference(x)
        n, c = shape[0], shape[1]
        assert out.shape == (n, 1, c), out.shape
        assert out.dtype == x.dtype, out.dtype
        assert jnp.array_equal(out, ref), f"mismatch for shape={shape} dtype={dtype}"

    # Also sanity-check the zero-copy (no kernel) fast path.
    x = jax.random.normal(keys[0], (2, 128, 1, 1), dtype=jnp.float32)
    assert jnp.array_equal(squeeze_extractor(x, use_kernel=False), _reference(x))

    print("KERNEL_OK")
</pallas_src>

<mosaic_0001>
module attributes {stable_mosaic.version = 11 : i64} {
  func.func @kernel(%arg0: memref<2x1x128xf32, #tpu.memory_space<any>>, %arg1: memref<2x1x128xf32, #tpu.memory_space<any>>, %arg2: memref<1x!tpu.dma_semaphore, #tpu.memory_space<semaphore_mem>>) attributes {dimension_semantics = [], scalar_prefetch = 0 : i64, scratch_operands = 1 : i64, tpu.core_type = #tpu.core_type<tc>} {
    %c0_i32 = arith.constant 0 : i32
    %c0_i32_0 = arith.constant 0 : i32
    %c0_i32_1 = arith.constant 0 : i32
    %c0_i32_2 = arith.constant 0 : i32
    %0 = tpu.memref_slice %arg0[%c0_i32_0, %c0_i32_1, %c0_i32_2] : memref<2x1x128xf32, #tpu.memory_space<any>> -> memref<2x1x128xf32, #tpu.memory_space<any>>
    %c0_i32_3 = arith.constant 0 : i32
    %c0_i32_4 = arith.constant 0 : i32
    %c0_i32_5 = arith.constant 0 : i32
    %1 = tpu.memref_slice %arg1[%c0_i32_3, %c0_i32_4, %c0_i32_5] : memref<2x1x128xf32, #tpu.memory_space<any>> -> memref<2x1x128xf32, #tpu.memory_space<any>>
    %2 = tpu.memref_slice %arg2[%c0_i32] : memref<1x!tpu.dma_semaphore, #tpu.memory_space<semaphore_mem>> -> memref<1x!tpu.dma_semaphore, #tpu.memory_space<semaphore_mem>>
    %3 = tpu.memref_squeeze %2 : memref<1x!tpu.dma_semaphore, #tpu.memory_space<semaphore_mem>> -> memref<!tpu.dma_semaphore, #tpu.memory_space<semaphore_mem>>
    tpu.enqueue_dma source(%0 : memref<2x1x128xf32, #tpu.memory_space<any>>) target(%1 : memref<2x1x128xf32, #tpu.memory_space<any>>) target_semaphore(%3 : memref<!tpu.dma_semaphore, #tpu.memory_space<semaphore_mem>>)
    %c0_i32_6 = arith.constant 0 : i32
    %c0_i32_7 = arith.constant 0 : i32
    %c0_i32_8 = arith.constant 0 : i32
    %c0_i32_9 = arith.constant 0 : i32
    %4 = tpu.memref_slice %arg0[%c0_i32_7, %c0_i32_8, %c0_i32_9] : memref<2x1x128xf32, #tpu.memory_space<any>> -> memref<2x1x128xf32, #tpu.memory_space<any>>
    %c0_i32_10 = arith.constant 0 : i32
    %c0_i32_11 = arith.constant 0 : i32
    %c0_i32_12 = arith.constant 0 : i32
    %5 = tpu.memref_slice %arg1[%c0_i32_10, %c0_i32_11, %c0_i32_12] : memref<2x1x128xf32, #tpu.memory_space<any>> -> memref<2x1x128xf32, #tpu.memory_space<any>>
    %6 = tpu.memref_slice %arg2[%c0_i32_6] : memref<1x!tpu.dma_semaphore, #tpu.memory_space<semaphore_mem>> -> memref<1x!tpu.dma_semaphore, #tpu.memory_space<semaphore_mem>>
    %7 = tpu.memref_squeeze %6 : memref<1x!tpu.dma_semaphore, #tpu.memory_space<semaphore_mem>> -> memref<!tpu.dma_semaphore, #tpu.memory_space<semaphore_mem>>
    tpu.wait_dma2 semaphore(%7 : memref<!tpu.dma_semaphore, #tpu.memory_space<semaphore_mem>>) src(%4 : memref<2x1x128xf32, #tpu.memory_space<any>>) dst(%5 : memref<2x1x128xf32, #tpu.memory_space<any>>)
    return
  }
}

</mosaic_0001>

<llo_original>
// kernel: tpu_custom_call.1
$region0: #{tpu_custom_call.1}
  #allocation0 [shape = 'u32[]', space=smem, size = 0x4, offset = 0x4, fixed_abs, tag = 'smem constant byte address 0x4 - core index']
  #allocation1 [shape = 'u32[144,128]{1,0:T(1,128)}', space=vmem, size = 0x12000, scoped, tag = 'internal scratch']
  #allocation2 [shape = 's32[1]{0}', space=sflag, size = 0x4, scoped, tag = 'scratch operand']
  #allocation3 [shape = 's32[]', space=sflag, size = 0x4, offset = 0, fixed_abs, tag = 'sflag constant byte address 0x0 - dummy sync flag']
  #allocation4 [shape = 'u32[0]{0}', space=smem, size = 0, offset = 0, fixed_abs, tag = 'smem constant byte address 0x0 - null']
  %s0 = inlined_call_operand.hbm [shape: f32[2,1,128], index: 0, kind: input, shape index: {}]
  %s1 = inlined_call_operand.hbm [shape: f32[2,1,128], index: 1, kind: output, shape index: {}]
  %s2 = sld [smem:[#allocation0]]
  $region2: #{tpu_custom_call.1} parent=0
    _
  %s4 = ssub.s32 1, %s2
  %s5 = scalar_select 0, %s4, %s2
  %s7 = sshll.u32 1, 14
  %s8 = sxor.u32 4294967295, %s7
  %s11 = sshll.u32 3, 24
  %s12 = sxor.u32 4294967295, %s11
  %s13 = sand.u32 0, %s12
  %s15 = sor.u32 %s13, 0
  %18 = dma.general %s0, 32, %s1, [#allocation2], [#allocation3], [#allocation4], %s15, 0
  %s19 = smul.u32 2, 1
  %s20 = smul.u32 %s19, 1
  %s21 = sshll.u32 %s20, 4
  %22 = dma.done [#allocation2], %s21
  %23 = vsyncmov [#allocation2]
  %s24 = vpop.sfrf %23
  %p25 = scmp.eq.s32.totalorder %s24, 0
  %p26 = pneg %p25
  %28 = shalt.err (%p26)

</llo_original>
